<compile_context>
chip_gen: v6e
topology: v6e:2x2x1
jax: 0.10.0
libtpu: 0.0.40
codegen_flags: <defaults>
</compile_context>

<pallas_src>
import functools

import jax
import jax.numpy as jnp
from jax.experimental import pallas as pl
from jax.experimental.pallas import tpu as pltpu


_LANE = 128
_TARGET_BLOCK_BYTES = 4 * 1024 * 1024      # ~4 MiB per block (per buffer)
_MIN_PALLAS_BYTES = 256 * 1024             # below this, let XLA fuse it

# Dtypes the kernel loads natively (widening happens on-chip, so narrow
# integer images are read at 1 byte/elem from HBM instead of 4).
_KERNEL_NATIVE_DTYPES = (jnp.float32, jnp.bfloat16, jnp.float16,
                         jnp.int8, jnp.uint8, jnp.int32, jnp.uint32)


def _affine_kernel(x_ref, o_ref, *, scale, bias):
    # out = x * scale + bias  ==  (x - min) / (max - min); pure VPU elementwise.
    x = x_ref[...].astype(jnp.float32)
    o_ref[...] = (x * scale + bias).astype(o_ref.dtype)


def _pick_lane_width(total):
    """Widest lane-dense (multiple of 128) factor of `total`, to avoid padding.

    Falls back to 128 with padding of at most 127 elements."""
    for w in (2048, 1024, 512, 256, 128):
        if total % w == 0:
            return w, False
    return _LANE, True


def fixval_minmax_normalize(x, min_value=0.0, max_value=5.0, *,
                            block_bytes=_TARGET_BLOCK_BYTES,
                            min_pallas_bytes=_MIN_PALLAS_BYTES):
    """(x - min_value) / (max_value - min_value), elementwise, via Pallas TPU."""
    min_value = float(min_value)
    max_value = float(max_value)
    if max_value == min_value:
        raise ValueError("max_value must differ from min_value")
    scale = 1.0 / (max_value - min_value)
    bias = -min_value * scale

    x = jnp.asarray(x)
    orig_shape = x.shape

    # torch semantics: float stays its dtype, integer/bool true-divides to float.
    if jnp.issubdtype(x.dtype, jnp.floating):
        out_dtype = x.dtype
    else:
        out_dtype = jnp.float32
    # Dtypes the kernel can't load natively get widened in the wrapper.
    if not any(x.dtype == jnp.dtype(d) for d in _KERNEL_NATIVE_DTYPES):
        x = x.astype(jnp.float32)

    in_bytes = jnp.dtype(x.dtype).itemsize
    out_bytes = jnp.dtype(out_dtype).itemsize

    total = x.size
    if total == 0:
        return jnp.zeros(orig_shape, out_dtype)

    # Small tensors: launch + glue dominates; plain XLA fusion wins.
    if total * (in_bytes + out_bytes) < min_pallas_bytes:
        out = (x.astype(jnp.float32) * scale + bias).astype(out_dtype)
        return out.reshape(orig_shape)

    # ---- flatten to a lane-dense 2-D slab (rows, width) ---------------------
    width, needs_pad = _pick_lane_width(total)
    flat = x.reshape(-1)
    padded_total = total
    if needs_pad:
        padded_total = pl.cdiv(total, width) * width   # at most width-1 extra
        flat = jnp.pad(flat, (0, padded_total - total))
    rows = padded_total // width
    x2d = flat.reshape(rows, width)

    # ---- tiling: big blocks (~block_bytes) to reach HBM roofline ------------
    block_elems = max(width * 8, block_bytes // max(in_bytes, out_bytes))
    tile_rows = max(8, (block_elems // width) // 8 * 8)
    if tile_rows >= 32:
        # multiple of 32 sublanes covers the minimum tile of any packed dtype
        tile_rows = (tile_rows // 32) * 32
    if tile_rows >= rows:
        tile_rows = rows                 # single full-extent block
    grid = (pl.cdiv(rows, tile_rows),)   # ragged last block is masked by Pallas

    block_nbytes = tile_rows * width * (in_bytes + out_bytes)
    # double-buffered in + out, plus slack; capped so it fits v7x's 64 MiB VMEM
    vmem_limit = min(48 << 20, max(16 << 20, 2 * block_nbytes + (8 << 20)))

    kernel = functools.partial(_affine_kernel, scale=scale, bias=bias)

    out2d = pl.pallas_call(
        kernel,
        out_shape=jax.ShapeDtypeStruct((rows, width), out_dtype),
        grid_spec=pltpu.PrefetchScalarGridSpec(
            num_scalar_prefetch=0,
            grid=grid,
            in_specs=[pl.BlockSpec((tile_rows, width), lambda i: (i, 0))],
            out_specs=pl.BlockSpec((tile_rows, width), lambda i: (i, 0)),
        ),
        compiler_params=pltpu.CompilerParams(
            dimension_semantics=("parallel",),   # shards grid over v7x's 2 TCs
            vmem_limit_bytes=vmem_limit,
        ),
        cost_estimate=pl.CostEstimate(
            flops=2 * total,
            transcendentals=0,
            bytes_accessed=total * (in_bytes + out_bytes),
        ),
    )(x2d)

    if needs_pad:
        out = out2d.reshape(-1)[:total].reshape(orig_shape)
    else:
        out = out2d.reshape(orig_shape)
    return out


if __name__ == "__main__":
    key = jax.random.PRNGKey(0)
    k1, k2 = jax.random.split(key)
    min_value, max_value = 0.0, 5.0

    # 1) small NCHW float input, as the Perception transform would see.
    x = jax.random.uniform(k1, (2, 4, 16, 16), dtype=jnp.float32,
                           minval=0.0, maxval=5.0)
    out = jax.block_until_ready(
        fixval_minmax_normalize(x, min_value, max_value, min_pallas_bytes=0))
    ref = (x - min_value) / (max_value - min_value)
    assert out.shape == x.shape and out.dtype == x.dtype
    assert jnp.allclose(out, ref, atol=1e-6), "float path mismatch"

    # 2) integer input (e.g. uint8 image): read natively, promoted to float32
    #    on-chip (no separate HBM widening pass).
    xi = jax.random.randint(k2, (2, 4, 16, 16), 0, 6, dtype=jnp.int32).astype(jnp.uint8)
    outi = jax.block_until_ready(
        fixval_minmax_normalize(xi, min_value, max_value, min_pallas_bytes=0))
    refi = (xi.astype(jnp.float32) - min_value) / (max_value - min_value)
    assert outi.dtype == jnp.float32 and outi.shape == xi.shape
    assert jnp.allclose(outi, refi, atol=1e-6), "integer path mismatch"

    # 3) ragged size (not a multiple of 128): exercises the one-tile tail pad.
    xr = jax.random.uniform(k1, (3, 5, 7), dtype=jnp.float32,
                            minval=0.0, maxval=5.0)
    outr = jax.block_until_ready(
        fixval_minmax_normalize(xr, min_value, max_value, min_pallas_bytes=0))
    refr = (xr - min_value) / (max_value - min_value)
    assert outr.shape == xr.shape and jnp.allclose(outr, refr, atol=1e-6), \
        "ragged path mismatch"

    print("KERNEL_OK")
</pallas_src>

<mosaic_0001>
module attributes {stable_mosaic.version = 11 : i64} {
  func.func @_affine_kernel(%arg0: i32, %arg1: memref<1x2048xf32, #tpu.memory_space<vmem>>, %arg2: memref<1x2048xf32, #tpu.memory_space<vmem>>) attributes {dimension_semantics = [#tpu.dimension_semantics<parallel>], iteration_bounds = array<i64: 1>, scalar_prefetch = 0 : i64, scratch_operands = 0 : i64, tpu.core_type = #tpu.core_type<tc>, window_params = [{transform_indices = @transform_0, window_bounds = array<i64: 1, 2048>}, {transform_indices = @transform_1, window_bounds = array<i64: 1, 2048>}]} {
    %c0 = arith.constant 0 : index
    %c0_0 = arith.constant 0 : index
    %0 = vector.load %arg1[%c0, %c0_0] : memref<1x2048xf32, #tpu.memory_space<vmem>>, vector<1x2048xf32>
    %cst = arith.constant 2.000000e-01 : f32
    %1 = vector.broadcast %cst : f32 to vector<1x2048xf32>
    %2 = arith.mulf %0, %1 : vector<1x2048xf32>
    %cst_1 = arith.constant -0.000000e+00 : f32
    %3 = vector.broadcast %cst_1 : f32 to vector<1x2048xf32>
    %4 = arith.addf %2, %3 : vector<1x2048xf32>
    %c0_2 = arith.constant 0 : index
    %c0_3 = arith.constant 0 : index
    %5 = vector.load %arg2[%c0_2, %c0_3] : memref<1x2048xf32, #tpu.memory_space<vmem>>, vector<1x2048xf32>
    tpu.vector_store %arg2[%c0_2, %c0_3], %4 {strides = array<i32>} : memref<1x2048xf32, #tpu.memory_space<vmem>>, vector<1x2048xf32>,
    return
  }
  func.func @transform_0(%arg0: i32) -> (i32, i32) {
    %c0_i32 = arith.constant 0 : i32
    %c0_i32_0 = arith.constant 0 : i32
    return %arg0, %c0_i32 : i32, i32
  }
  func.func @transform_1(%arg0: i32) -> (i32, i32) {
    %c0_i32 = arith.constant 0 : i32
    %c0_i32_0 = arith.constant 0 : i32
    return %arg0, %c0_i32 : i32, i32
  }
}

</mosaic_0001>

<llo_original>
// kernel: tpu_custom_call.1
$region0: #{tpu_custom_call.1}
  #allocation0 [shape = 'u32[]', space=smem, size = 0x4, offset = 0x4, fixed_abs, tag = 'smem constant byte address 0x4 - core index']
  #allocation1 [shape = 'u32[144,128]{1,0:T(1,128)}', space=vmem, size = 0x12000, scoped, tag = 'internal scratch']
  %s0 = inlined_call_operand.hbm [shape: f32[1,2048], index: 0, kind: input, shape index: {}]
  %s1 = inlined_call_operand.hbm [shape: f32[1,2048], index: 1, kind: output, shape index: {}]
  %s2 = sld [smem:[#allocation0]]
  $region18: #{tpu_custom_call.1} parent=0
    _
  %s4 = ssub.s32 1, %s2
  %s5 = scalar_select 0, %s4, %s2
  $region1: #{tpu_custom_call.1} parent=0
    #allocation2 [shape = 'u8[8192]{0}', space=vmem, size = 0x2000, scoped, tag = 'input window, operand 0, single buffered']
    #allocation3 [shape = 's32[1]{0}', space=sflag, size = 0x4, scoped, tag = 'scoped memory for tpu_custom_call.1']
    #allocation4 [shape = 's32[1]{0}', space=sflag, size = 0x4, scoped, tag = 'scoped memory for tpu_custom_call.1']
    #allocation5 [shape = 'u8[8192]{0}', space=vmem, size = 0x2000, scoped, tag = 'output window, operand 0, single buffered']
    %6 = vsyncpa [#allocation3], 0
    %7 = vsyncpa [#allocation4], 0
    // Predicated region
    $region2: #{tpu_custom_call.1} parent=1 // pred_check
      _
    $region3: #{tpu_custom_call.1} parent=1 // pred_check_branch
      %9 = sbr.rel (0) target = $region5
    $region4: #{tpu_custom_call.1} parent=1 // pred_region
      %s11 = ssub.s32 256, 256
      %12 = vsyncadd [#allocation3], %s11
      %s14 = sshll.u32 [#allocation2], 4
      %s15 = int_to_ptr.vmem [resolvable:$true] %s14
      %17 = dma.hbm_to_vmem [thread:$0]  %s0, 256, %s15, [#allocation3]
    $region5: #{tpu_custom_call.1} parent=1 // pred_fallthru
      _
    // Predicated region
    $region6: #{tpu_custom_call.1} parent=1 // pred_check
      _
    $region7: #{tpu_custom_call.1} parent=1 // pred_check_branch
      %19 = sbr.rel (0) target = $region9
    $region8: #{tpu_custom_call.1} parent=1 // pred_region
      %20 = dma.done [#allocation3], 256
    $region9: #{tpu_custom_call.1} parent=1 // pred_fallthru
      _
    %v21 = vld [vmem:[#allocation2] sm:$0xff]
    %v22 = vld [vmem:[#allocation2 + $0x8] sm:$0xff]
    %v23 = vmul.f32 %v21, 0.2
    %v24 = vmul.f32 %v22, 0.2
    %25 = vst [vmem:[#allocation5] sm:$0xff] %v23
    %26 = vst [vmem:[#allocation5 + $0x8] sm:$0xff] %v24
    // Predicated region
    $region10: #{tpu_custom_call.1} parent=1 // pred_check
      _
    $region11: #{tpu_custom_call.1} parent=1 // pred_check_branch
      %28 = sbr.rel (0) target = $region13
    $region12: #{tpu_custom_call.1} parent=1 // pred_region
      %s30 = ssub.s32 256, 256
      %31 = vsyncadd [#allocation4], %s30
      %s33 = sshll.u32 [#allocation5], 4
      %s34 = int_to_ptr.vmem [resolvable:$true] %s33
      %36 = dma.vmem_to_hbm [thread:$0]  %s34, 256, %s1, [#allocation4]
    $region13: #{tpu_custom_call.1} parent=1 // pred_fallthru
      _
    // Predicated region
    $region14: #{tpu_custom_call.1} parent=1 // pred_check
      _
    $region15: #{tpu_custom_call.1} parent=1 // pred_check_branch
      %38 = sbr.rel (0) target = $region17
    $region16: #{tpu_custom_call.1} parent=1 // pred_region
      %39 = dma.done [#allocation4], 256
    $region17: #{tpu_custom_call.1} parent=1 // pred_fallthru
      _
    %40 = vsyncpa [#allocation3], 1
    %41 = vsyncpa [#allocation4], 1

</llo_original>
